<compile_context>
chip_gen: v5e
topology: v5e:2x2
jax: 0.10.0
libtpu: 0.0.40
codegen_flags: <defaults>
</compile_context>

<pallas_src>
import functools
import math

import jax
import jax.numpy as jnp
from jax import lax
from jax.experimental import pallas as pl
from jax.experimental.pallas import tpu as pltpu


def _embed_kernel(ids_ref, tok_hbm_ref, pos_ref, out_ref,
                  gather_ref, sem_ref, *, seq_len, tq, unroll):
    """One grid step: add one pos tile to `tq` gathered token-embedding rows."""
    s = pl.program_id(0)            # seq-tile index (outer grid axis)
    b = pl.program_id(1)            # batch index    (inner grid axis)
    nb = pl.num_programs(1)

    def issue_gather(b_target, slot):
        """Issue tq row-gather DMAs for batch element `b_target` into `slot`."""
        base = b_target * seq_len + s * tq

        def body(r, carry):
            row = ids_ref[base + r]
            pltpu.make_async_copy(tok_hbm_ref.at[row],
                                  gather_ref.at[slot, r],
                                  sem_ref.at[slot]).start()
            return carry

        lax.fori_loop(0, tq, body, 0, unroll=unroll)

    cur_slot = b % 2

    # Prime: the first batch element of each seq tile gathers its own rows.
    @pl.when(b == 0)
    def _():
        issue_gather(0, 0)

    # Prefetch the next batch element's rows into the other slot; those DMAs
    # complete while this step waits / adds / writes back its output block.
    @pl.when(b + 1 < nb)
    def _():
        issue_gather(b + 1, 1 - cur_slot)

    # Single collapsed wait: the tq row copies into `cur_slot` sum to exactly
    # tq*D*itemsize bytes, matching one (tq, D)-sized descriptor (src unused).
    pltpu.make_async_copy(gather_ref.at[cur_slot], gather_ref.at[cur_slot],
                          sem_ref.at[cur_slot]).wait()

    # Native-dtype add (bf16 VALU on v6e/v7x when the tables are bf16).
    out_ref[0] = (gather_ref[cur_slot] + pos_ref[...]).astype(out_ref.dtype)


def _pick_row_tile(seq_len, embed_dim, itemsize, *, max_rows=256,
                   tile_bytes_budget=2 << 20):
    """Largest row tile that divides seq_len, is a multiple of 8, and keeps one
    (tq, D) tile under the byte budget (so the double-buffered gather + pos +
    output buffers fit v7x's 64 MiB/TC and v5e's small scoped VMEM)."""
    budget_rows = max(8, tile_bytes_budget // max(1, embed_dim * itemsize))
    target = int(min(max_rows, budget_rows))
    target -= target % 8
    target = max(target, 8)
    if seq_len <= target:
        return seq_len
    for cand in range(target, 7, -1):
        if seq_len % cand == 0 and cand % 8 == 0:
            return cand
    return seq_len


def gpt_input_embedding(tok_idx, token_table, pos_table, *, dropout_p=0.1,
                        training=False, row_tile=256):
    """Forward pass of gpt_input_Embedding.

    tok_idx:     (bs, seq) int token ids
    token_table: (vocab_size, embed_dim) float
    pos_table:   (context_len, embed_dim) float
    returns:     (bs, seq, embed_dim) float  (same dtype as token_table)
    """
    bs, seq_len = tok_idx.shape
    vocab_size, embed_dim = token_table.shape
    context_len = pos_table.shape[0]
    assert seq_len <= context_len
    assert pos_table.shape[1] == embed_dim

    if training:
        # TODO(synk): training-mode nn.Dropout (stochastic mask + 1/(1-p) scale)
        # via pltpu.prng_seed/prng_random_bits; eval-mode dropout is identity.
        raise NotImplementedError("training-mode dropout not implemented")

    itemsize = jnp.dtype(token_table.dtype).itemsize
    tq = _pick_row_tile(seq_len, embed_dim, itemsize, max_rows=row_tile)
    if tq % 8 != 0 and tq != context_len:
        # TODO(synk): pad seq_len up to a multiple of 8 for awkward lengths.
        raise NotImplementedError(
            "seq_len must be a multiple of 8 (or equal to context_len)")

    num_seq_tiles = seq_len // tq
    # Issue-loop unroll: full for small tiles, by 8 (or the largest common
    # divisor with 8) for big ones so the trip count stays divisible.
    unroll = tq if tq <= 64 else math.gcd(tq, 8)

    # TODO(synk): for very long bs*seq the flat id array may exceed SMEM; switch
    # ids to a per-tile SMEM BlockSpec (and drop cross-batch prefetch) if so.
    ids_flat = tok_idx.reshape(bs * seq_len).astype(jnp.int32)

    tile_bytes = tq * embed_dim * itemsize
    # Live VMEM: 2 gather slots + 2 pos buffers + 2 out buffers, plus margin.
    vmem_limit = int(min(max(8 * tile_bytes + (2 << 20), 32 << 20), 64 << 20))

    cost = pl.CostEstimate(
        flops=bs * seq_len * embed_dim,
        transcendentals=0,
        bytes_accessed=(2 * bs * seq_len * embed_dim + seq_len * embed_dim)
        * itemsize + bs * seq_len * 4,
    )

    kernel = functools.partial(_embed_kernel, seq_len=seq_len, tq=tq,
                               unroll=unroll)

    out = pl.pallas_call(
        kernel,
        out_shape=jax.ShapeDtypeStruct((bs, seq_len, embed_dim),
                                       token_table.dtype),
        grid_spec=pltpu.PrefetchScalarGridSpec(
            num_scalar_prefetch=1,              # ids_flat lives in SMEM
            grid=(num_seq_tiles, bs),           # seq-tile outer, batch inner
            in_specs=[
                # Token table stays in HBM; rows are gathered manually via DMA.
                pl.BlockSpec(memory_space=pl.ANY),
                # Positional table: contiguous (tq, D) slice whose block index
                # ignores the inner batch axis -> stays VMEM-resident across it.
                pl.BlockSpec((tq, embed_dim), lambda s, b, ids: (s, 0)),
            ],
            out_specs=pl.BlockSpec((1, tq, embed_dim),
                                   lambda s, b, ids: (b, s, 0)),
            scratch_shapes=[
                pltpu.VMEM((2, tq, embed_dim), token_table.dtype),  # 2 gather slots
                pltpu.SemaphoreType.DMA((2,)),                      # per-slot sems
            ],
        ),
        # TODO(synk): on v7x, pltpu.CORE_PARALLEL on the seq-tile axis would shard
        # tiles across both TensorCores (prefetch already stays within one tile).
        compiler_params=pltpu.CompilerParams(
            dimension_semantics=("parallel", "arbitrary"),
            vmem_limit_bytes=vmem_limit),
        cost_estimate=cost,
    )(ids_flat, token_table, pos_table)

    return out


if __name__ == "__main__":
    # Small, deterministic example consistent with the module's __init__.
    vocab_size, context_len, embed_dim = 64, 16, 128
    bs, seq_len = 2, 8

    key = jax.random.PRNGKey(0)
    k_tok, k_pos, k_ids = jax.random.split(key, 3)

    token_table = jax.random.normal(k_tok, (vocab_size, embed_dim), jnp.float32) * 0.02
    pos_table = jax.random.normal(k_pos, (context_len, embed_dim), jnp.float32) * 0.02
    tok_idx = jax.random.randint(k_ids, (bs, seq_len), 0, vocab_size, jnp.int32)

    out = gpt_input_embedding(tok_idx, token_table, pos_table,
                              dropout_p=0.1, training=False)
    out = jax.block_until_ready(out)

    # Pure-JAX reference (embedding gather + broadcasted positional add).
    ref = token_table[tok_idx] + pos_table[jnp.arange(seq_len)][None, :, :]
    assert out.shape == (bs, seq_len, embed_dim)
    assert jnp.allclose(out, ref, atol=1e-6), "mismatch vs reference"

    print("KERNEL_OK")
</pallas_src>

<mosaic_0001>
module attributes {stable_mosaic.version = 11 : i64} {
  func.func @_embed_kernel(%arg0: i32, %arg1: i32, %arg2: memref<16xi32, #tpu.memory_space<smem>>, %arg3: memref<64x128xf32, #tpu.memory_space<any>>, %arg4: memref<8x128xf32, #tpu.memory_space<vmem>>, %arg5: memref<1x8x128xf32, #tpu.memory_space<vmem>>, %arg6: memref<2x8x128xf32, #tpu.memory_space<vmem>>, %arg7: memref<2x!tpu.dma_semaphore, #tpu.memory_space<semaphore_mem>>) attributes {dimension_semantics = [#tpu.dimension_semantics<parallel>, #tpu.dimension_semantics<arbitrary>], iteration_bounds = array<i64: 1, 2>, scalar_prefetch = 1 : i64, scratch_operands = 2 : i64, tpu.core_type = #tpu.core_type<tc>, window_params = [{}, {transform_indices = @transform_1, window_bounds = array<i64: 8, 128>}, {transform_indices = @transform_2, window_bounds = array<i64: 1, 8, 128>}]} {
    %c2_i32 = arith.constant 2 : i32
    %c0_i32 = arith.constant 0 : i32
    %0 = arith.cmpi eq, %c2_i32, %c0_i32 : i32
    %c1_i32 = arith.constant 1 : i32
    %1 = arith.select %0, %c1_i32, %c2_i32 : i32
    %2 = arith.remsi %arg1, %1 : i32
    %c0_i32_0 = arith.constant 0 : i32
    %3 = arith.cmpi ne, %2, %c0_i32_0 : i32
    %c0_i32_1 = arith.constant 0 : i32
    %4 = arith.cmpi slt, %2, %c0_i32_1 : i32
    %c0_i32_2 = arith.constant 0 : i32
    %5 = arith.cmpi slt, %1, %c0_i32_2 : i32
    %6 = arith.xori %4, %5 : i1
    %7 = arith.andi %6, %3 : i1
    %8 = arith.addi %2, %1 : i32
    %9 = arith.select %7, %8, %2 : i32
    %c0_i32_3 = arith.constant 0 : i32
    %10 = arith.cmpi eq, %arg1, %c0_i32_3 : i32
    %11 = arith.extui %10 : i1 to i32
    %c0_i32_4 = arith.constant 0 : i32
    %12 = arith.cmpi ne, %11, %c0_i32_4 : i32
    scf.if %12 {
      %c8_i32 = arith.constant 8 : i32
      %31 = arith.muli %arg0, %c8_i32 : i32
      %c0_i32_18 = arith.constant 0 : i32
      %32 = arith.addi %c0_i32_18, %31 : i32
      %c0_i32_19 = arith.constant 0 : i32
      %33 = arith.addi %32, %c0_i32_19 : i32
      %34 = arith.index_cast %33 : i32 to index
      %35 = memref.load %arg2[%34] : memref<16xi32, #tpu.memory_space<smem>>
      %c0_i32_20 = arith.constant 0 : i32
      %c0_i32_21 = arith.constant 0 : i32
      %c0_i32_22 = arith.constant 0 : i32
      %36 = tpu.memref_slice %arg3[%35, %c0_i32_22] : memref<64x128xf32, #tpu.memory_space<any>> -> memref<1x128xf32, #tpu.memory_space<any>>
      %37 = tpu.memref_squeeze %36 : memref<1x128xf32, #tpu.memory_space<any>> -> memref<128xf32, #tpu.memory_space<any>>
      %c0_i32_23 = arith.constant 0 : i32
      %38 = tpu.memref_slice %arg6[%c0_i32_20, %c0_i32_19, %c0_i32_23] : memref<2x8x128xf32, #tpu.memory_space<vmem>> -> memref<1x1x128xf32, #tpu.memory_space<vmem>>
      %39 = tpu.memref_squeeze %38 : memref<1x1x128xf32, #tpu.memory_space<vmem>> -> memref<128xf32, #tpu.memory_space<vmem>>
      %40 = tpu.memref_slice %arg7[%c0_i32_21] : memref<2x!tpu.dma_semaphore, #tpu.memory_space<semaphore_mem>> -> memref<1x!tpu.dma_semaphore, #tpu.memory_space<semaphore_mem>>
      %41 = tpu.memref_squeeze %40 : memref<1x!tpu.dma_semaphore, #tpu.memory_space<semaphore_mem>> -> memref<!tpu.dma_semaphore, #tpu.memory_space<semaphore_mem>>
      tpu.enqueue_dma source(%37 : memref<128xf32, #tpu.memory_space<any>>) target(%39 : memref<128xf32, #tpu.memory_space<vmem>>) target_semaphore(%41 : memref<!tpu.dma_semaphore, #tpu.memory_space<semaphore_mem>>)
      %c1_i32_24 = arith.constant 1 : i32
      %42 = arith.addi %32, %c1_i32_24 : i32
      %43 = arith.index_cast %42 : i32 to index
      %44 = memref.load %arg2[%43] : memref<16xi32, #tpu.memory_space<smem>>
      %c0_i32_25 = arith.constant 0 : i32
      %c0_i32_26 = arith.constant 0 : i32
      %c0_i32_27 = arith.constant 0 : i32
      %45 = tpu.memref_slice %arg3[%44, %c0_i32_27] : memref<64x128xf32, #tpu.memory_space<any>> -> memref<1x128xf32, #tpu.memory_space<any>>
      %46 = tpu.memref_squeeze %45 : memref<1x128xf32, #tpu.memory_space<any>> -> memref<128xf32, #tpu.memory_space<any>>
      %c0_i32_28 = arith.constant 0 : i32
      %47 = tpu.memref_slice %arg6[%c0_i32_25, %c1_i32_24, %c0_i32_28] : memref<2x8x128xf32, #tpu.memory_space<vmem>> -> memref<1x1x128xf32, #tpu.memory_space<vmem>>
      %48 = tpu.memref_squeeze %47 : memref<1x1x128xf32, #tpu.memory_space<vmem>> -> memref<128xf32, #tpu.memory_space<vmem>>
      %49 = tpu.memref_slice %arg7[%c0_i32_26] : memref<2x!tpu.dma_semaphore, #tpu.memory_space<semaphore_mem>> -> memref<1x!tpu.dma_semaphore, #tpu.memory_space<semaphore_mem>>
      %50 = tpu.memref_squeeze %49 : memref<1x!tpu.dma_semaphore, #tpu.memory_space<semaphore_mem>> -> memref<!tpu.dma_semaphore, #tpu.memory_space<semaphore_mem>>
      tpu.enqueue_dma source(%46 : memref<128xf32, #tpu.memory_space<any>>) target(%48 : memref<128xf32, #tpu.memory_space<vmem>>) target_semaphore(%50 : memref<!tpu.dma_semaphore, #tpu.memory_space<semaphore_mem>>)
      %c2_i32_29 = arith.constant 2 : i32
      %51 = arith.addi %32, %c2_i32_29 : i32
      %52 = arith.index_cast %51 : i32 to index
      %53 = memref.load %arg2[%52] : memref<16xi32, #tpu.memory_space<smem>>
      %c0_i32_30 = arith.constant 0 : i32
      %c0_i32_31 = arith.constant 0 : i32
      %c0_i32_32 = arith.constant 0 : i32
      %54 = tpu.memref_slice %arg3[%53, %c0_i32_32] : memref<64x128xf32, #tpu.memory_space<any>> -> memref<1x128xf32, #tpu.memory_space<any>>
      %55 = tpu.memref_squeeze %54 : memref<1x128xf32, #tpu.memory_space<any>> -> memref<128xf32, #tpu.memory_space<any>>
      %c0_i32_33 = arith.constant 0 : i32
      %56 = tpu.memref_slice %arg6[%c0_i32_30, %c2_i32_29, %c0_i32_33] : memref<2x8x128xf32, #tpu.memory_space<vmem>> -> memref<1x1x128xf32, #tpu.memory_space<vmem>>
      %57 = tpu.memref_squeeze %56 : memref<1x1x128xf32, #tpu.memory_space<vmem>> -> memref<128xf32, #tpu.memory_space<vmem>>
      %58 = tpu.memref_slice %arg7[%c0_i32_31] : memref<2x!tpu.dma_semaphore, #tpu.memory_space<semaphore_mem>> -> memref<1x!tpu.dma_semaphore, #tpu.memory_space<semaphore_mem>>
      %59 = tpu.memref_squeeze %58 : memref<1x!tpu.dma_semaphore, #tpu.memory_space<semaphore_mem>> -> memref<!tpu.dma_semaphore, #tpu.memory_space<semaphore_mem>>
      tpu.enqueue_dma source(%55 : memref<128xf32, #tpu.memory_space<any>>) target(%57 : memref<128xf32, #tpu.memory_space<vmem>>) target_semaphore(%59 : memref<!tpu.dma_semaphore, #tpu.memory_space<semaphore_mem>>)
      %c3_i32 = arith.constant 3 : i32
      %60 = arith.addi %32, %c3_i32 : i32
      %61 = arith.index_cast %60 : i32 to index
      %62 = memref.load %arg2[%61] : memref<16xi32, #tpu.memory_space<smem>>
      %c0_i32_34 = arith.constant 0 : i32
      %c0_i32_35 = arith.constant 0 : i32
      %c0_i32_36 = arith.constant 0 : i32
      %63 = tpu.memref_slice %arg3[%62, %c0_i32_36] : memref<64x128xf32, #tpu.memory_space<any>> -> memref<1x128xf32, #tpu.memory_space<any>>
      %64 = tpu.memref_squeeze %63 : memref<1x128xf32, #tpu.memory_space<any>> -> memref<128xf32, #tpu.memory_space<any>>
      %c0_i32_37 = arith.constant 0 : i32
      %65 = tpu.memref_slice %arg6[%c0_i32_34, %c3_i32, %c0_i32_37] : memref<2x8x128xf32, #tpu.memory_space<vmem>> -> memref<1x1x128xf32, #tpu.memory_space<vmem>>
      %66 = tpu.memref_squeeze %65 : memref<1x1x128xf32, #tpu.memory_space<vmem>> -> memref<128xf32, #tpu.memory_space<vmem>>
      %67 = tpu.memref_slice %arg7[%c0_i32_35] : memref<2x!tpu.dma_semaphore, #tpu.memory_space<semaphore_mem>> -> memref<1x!tpu.dma_semaphore, #tpu.memory_space<semaphore_mem>>
      %68 = tpu.memref_squeeze %67 : memref<1x!tpu.dma_semaphore, #tpu.memory_space<semaphore_mem>> -> memref<!tpu.dma_semaphore, #tpu.memory_space<semaphore_mem>>
      tpu.enqueue_dma source(%64 : memref<128xf32, #tpu.memory_space<any>>) target(%66 : memref<128xf32, #tpu.memory_space<vmem>>) target_semaphore(%68 : memref<!tpu.dma_semaphore, #tpu.memory_space<semaphore_mem>>)
      %c4_i32 = arith.constant 4 : i32
      %69 = arith.addi %32, %c4_i32 : i32
      %70 = arith.index_cast %69 : i32 to index
      %71 = memref.load %arg2[%70] : memref<16xi32, #tpu.memory_space<smem>>
      %c0_i32_38 = arith.constant 0 : i32
      %c0_i32_39 = arith.constant 0 : i32
      %c0_i32_40 = arith.constant 0 : i32
      %72 = tpu.memref_slice %arg3[%71, %c0_i32_40] : memref<64x128xf32, #tpu.memory_space<any>> -> memref<1x128xf32, #tpu.memory_space<any>>
      %73 = tpu.memref_squeeze %72 : memref<1x128xf32, #tpu.memory_space<any>> -> memref<128xf32, #tpu.memory_space<any>>
      %c0_i32_41 = arith.constant 0 : i32
      %74 = tpu.memref_slice %arg6[%c0_i32_38, %c4_i32, %c0_i32_41] : memref<2x8x128xf32, #tpu.memory_space<vmem>> -> memref<1x1x128xf32, #tpu.memory_space<vmem>>
      %75 = tpu.memref_squeeze %74 : memref<1x1x128xf32, #tpu.memory_space<vmem>> -> memref<128xf32, #tpu.memory_space<vmem>>
      %76 = tpu.memref_slice %arg7[%c0_i32_39] : memref<2x!tpu.dma_semaphore, #tpu.memory_space<semaphore_mem>> -> memref<1x!tpu.dma_semaphore, #tpu.memory_space<semaphore_mem>>
      %77 = tpu.memref_squeeze %76 : memref<1x!tpu.dma_semaphore, #tpu.memory_space<semaphore_mem>> -> memref<!tpu.dma_semaphore, #tpu.memory_space<semaphore_mem>>
      tpu.enqueue_dma source(%73 : memref<128xf32, #tpu.memory_space<any>>) target(%75 : memref<128xf32, #tpu.memory_space<vmem>>) target_semaphore(%77 : memref<!tpu.dma_semaphore, #tpu.memory_space<semaphore_mem>>)
      %c5_i32 = arith.constant 5 : i32
      %78 = arith.addi %32, %c5_i32 : i32
      %79 = arith.index_cast %78 : i32 to index
      %80 = memref.load %arg2[%79] : memref<16xi32, #tpu.memory_space<smem>>
      %c0_i32_42 = arith.constant 0 : i32
      %c0_i32_43 = arith.constant 0 : i32
      %c0_i32_44 = arith.constant 0 : i32
      %81 = tpu.memref_slice %arg3[%80, %c0_i32_44] : memref<64x128xf32, #tpu.memory_space<any>> -> memref<1x128xf32, #tpu.memory_space<any>>
      %82 = tpu.memref_squeeze %81 : memref<1x128xf32, #tpu.memory_space<any>> -> memref<128xf32, #tpu.memory_space<any>>
      %c0_i32_45 = arith.constant 0 : i32
      %83 = tpu.memref_slice %arg6[%c0_i32_42, %c5_i32, %c0_i32_45] : memref<2x8x128xf32, #tpu.memory_space<vmem>> -> memref<1x1x128xf32, #tpu.memory_space<vmem>>
      %84 = tpu.memref_squeeze %83 : memref<1x1x128xf32, #tpu.memory_space<vmem>> -> memref<128xf32, #tpu.memory_space<vmem>>
      %85 = tpu.memref_slice %arg7[%c0_i32_43] : memref<2x!tpu.dma_semaphore, #tpu.memory_space<semaphore_mem>> -> memref<1x!tpu.dma_semaphore, #tpu.memory_space<semaphore_mem>>
      %86 = tpu.memref_squeeze %85 : memref<1x!tpu.dma_semaphore, #tpu.memory_space<semaphore_mem>> -> memref<!tpu.dma_semaphore, #tpu.memory_space<semaphore_mem>>
      tpu.enqueue_dma source(%82 : memref<128xf32, #tpu.memory_space<any>>) target(%84 : memref<128xf32, #tpu.memory_space<vmem>>) target_semaphore(%86 : memref<!tpu.dma_semaphore, #tpu.memory_space<semaphore_mem>>)
      %c6_i32 = arith.constant 6 : i32
      %87 = arith.addi %32, %c6_i32 : i32
      %88 = arith.index_cast %87 : i32 to index
      %89 = memref.load %arg2[%88] : memref<16xi32, #tpu.memory_space<smem>>
      %c0_i32_46 = arith.constant 0 : i32
      %c0_i32_47 = arith.constant 0 : i32
      %c0_i32_48 = arith.constant 0 : i32
      %90 = tpu.memref_slice %arg3[%89, %c0_i32_48] : memref<64x128xf32, #tpu.memory_space<any>> -> memref<1x128xf32, #tpu.memory_space<any>>
      %91 = tpu.memref_squeeze %90 : memref<1x128xf32, #tpu.memory_space<any>> -> memref<128xf32, #tpu.memory_space<any>>
      %c0_i32_49 = arith.constant 0 : i32
      %92 = tpu.memref_slice %arg6[%c0_i32_46, %c6_i32, %c0_i32_49] : memref<2x8x128xf32, #tpu.memory_space<vmem>> -> memref<1x1x128xf32, #tpu.memory_space<vmem>>
      %93 = tpu.memref_squeeze %92 : memref<1x1x128xf32, #tpu.memory_space<vmem>> -> memref<128xf32, #tpu.memory_space<vmem>>
      %94 = tpu.memref_slice %arg7[%c0_i32_47] : memref<2x!tpu.dma_semaphore, #tpu.memory_space<semaphore_mem>> -> memref<1x!tpu.dma_semaphore, #tpu.memory_space<semaphore_mem>>
      %95 = tpu.memref_squeeze %94 : memref<1x!tpu.dma_semaphore, #tpu.memory_space<semaphore_mem>> -> memref<!tpu.dma_semaphore, #tpu.memory_space<semaphore_mem>>
      tpu.enqueue_dma source(%91 : memref<128xf32, #tpu.memory_space<any>>) target(%93 : memref<128xf32, #tpu.memory_space<vmem>>) target_semaphore(%95 : memref<!tpu.dma_semaphore, #tpu.memory_space<semaphore_mem>>)
      %c7_i32 = arith.constant 7 : i32
      %96 = arith.addi %32, %c7_i32 : i32
      %97 = arith.index_cast %96 : i32 to index
      %98 = memref.load %arg2[%97] : memref<16xi32, #tpu.memory_space<smem>>
      %c0_i32_50 = arith.constant 0 : i32
      %c0_i32_51 = arith.constant 0 : i32
      %c0_i32_52 = arith.constant 0 : i32
      %99 = tpu.memref_slice %arg3[%98, %c0_i32_52] : memref<64x128xf32, #tpu.memory_space<any>> -> memref<1x128xf32, #tpu.memory_space<any>>
      %100 = tpu.memref_squeeze %99 : memref<1x128xf32, #tpu.memory_space<any>> -> memref<128xf32, #tpu.memory_space<any>>
      %c0_i32_53 = arith.constant 0 : i32
      %101 = tpu.memref_slice %arg6[%c0_i32_50, %c7_i32, %c0_i32_53] : memref<2x8x128xf32, #tpu.memory_space<vmem>> -> memref<1x1x128xf32, #tpu.memory_space<vmem>>
      %102 = tpu.memref_squeeze %101 : memref<1x1x128xf32, #tpu.memory_space<vmem>> -> memref<128xf32, #tpu.memory_space<vmem>>
      %103 = tpu.memref_slice %arg7[%c0_i32_51] : memref<2x!tpu.dma_semaphore, #tpu.memory_space<semaphore_mem>> -> memref<1x!tpu.dma_semaphore, #tpu.memory_space<semaphore_mem>>
      %104 = tpu.memref_squeeze %103 : memref<1x!tpu.dma_semaphore, #tpu.memory_space<semaphore_mem>> -> memref<!tpu.dma_semaphore, #tpu.memory_space<semaphore_mem>>
      tpu.enqueue_dma source(%100 : memref<128xf32, #tpu.memory_space<any>>) target(%102 : memref<128xf32, #tpu.memory_space<vmem>>) target_semaphore(%104 : memref<!tpu.dma_semaphore, #tpu.memory_space<semaphore_mem>>)
      %c8_i32_54 = arith.constant 8 : i32
    } else {
    }
    %c1_i32_5 = arith.constant 1 : i32
    %13 = arith.addi %arg1, %c1_i32_5 : i32
    %c2_i32_6 = arith.constant 2 : i32
    %14 = arith.cmpi slt, %13, %c2_i32_6 : i32
    %15 = arith.extui %14 : i1 to i32
    %c0_i32_7 = arith.constant 0 : i32
    %16 = arith.cmpi ne, %15, %c0_i32_7 : i32
    scf.if %16 {
      %c1_i32_18 = arith.constant 1 : i32
      %31 = arith.addi %arg1, %c1_i32_18 : i32
      %c1_i32_19 = arith.constant 1 : i32
      %32 = arith.subi %c1_i32_19, %9 : i32
      %c8_i32 = arith.constant 8 : i32
      %33 = arith.muli %31, %c8_i32 : i32
      %c8_i32_20 = arith.constant 8 : i32
      %34 = arith.muli %arg0, %c8_i32_20 : i32
      %35 = arith.addi %33, %34 : i32
      %c0_i32_21 = arith.constant 0 : i32
      %36 = arith.addi %35, %c0_i32_21 : i32
      %37 = arith.index_cast %36 : i32 to index
      %38 = memref.load %arg2[%37] : memref<16xi32, #tpu.memory_space<smem>>
      %c0_i32_22 = arith.constant 0 : i32
      %39 = tpu.memref_slice %arg3[%38, %c0_i32_22] : memref<64x128xf32, #tpu.memory_space<any>> -> memref<1x128xf32, #tpu.memory_space<any>>
      %40 = tpu.memref_squeeze %39 : memref<1x128xf32, #tpu.memory_space<any>> -> memref<128xf32, #tpu.memory_space<any>>
      %c0_i32_23 = arith.constant 0 : i32
      %41 = tpu.memref_slice %arg6[%32, %c0_i32_21, %c0_i32_23] : memref<2x8x128xf32, #tpu.memory_space<vmem>> -> memref<1x1x128xf32, #tpu.memory_space<vmem>>
      %42 = tpu.memref_squeeze %41 : memref<1x1x128xf32, #tpu.memory_space<vmem>> -> memref<128xf32, #tpu.memory_space<vmem>>
      %43 = tpu.memref_slice %arg7[%32] : memref<2x!tpu.dma_semaphore, #tpu.memory_space<semaphore_mem>> -> memref<1x!tpu.dma_semaphore, #tpu.memory_space<semaphore_mem>>
      %44 = tpu.memref_squeeze %43 : memref<1x!tpu.dma_semaphore, #tpu.memory_space<semaphore_mem>> -> memref<!tpu.dma_semaphore, #tpu.memory_space<semaphore_mem>>
      tpu.enqueue_dma source(%40 : memref<128xf32, #tpu.memory_space<any>>) target(%42 : memref<128xf32, #tpu.memory_space<vmem>>) target_semaphore(%44 : memref<!tpu.dma_semaphore, #tpu.memory_space<semaphore_mem>>)
      %c1_i32_24 = arith.constant 1 : i32
      %45 = arith.addi %35, %c1_i32_24 : i32
      %46 = arith.index_cast %45 : i32 to index
      %47 = memref.load %arg2[%46] : memref<16xi32, #tpu.memory_space<smem>>
      %c0_i32_25 = arith.constant 0 : i32
      %48 = tpu.memref_slice %arg3[%47, %c0_i32_25] : memref<64x128xf32, #tpu.memory_space<any>> -> memref<1x128xf32, #tpu.memory_space<any>>
      %49 = tpu.memref_squeeze %48 : memref<1x128xf32, #tpu.memory_space<any>> -> memref<128xf32, #tpu.memory_space<any>>
      %c0_i32_26 = arith.constant 0 : i32
      %50 = tpu.memref_slice %arg6[%32, %c1_i32_24, %c0_i32_26] : memref<2x8x128xf32, #tpu.memory_space<vmem>> -> memref<1x1x128xf32, #tpu.memory_space<vmem>>
      %51 = tpu.memref_squeeze %50 : memref<1x1x128xf32, #tpu.memory_space<vmem>> -> memref<128xf32, #tpu.memory_space<vmem>>
      %52 = tpu.memref_slice %arg7[%32] : memref<2x!tpu.dma_semaphore, #tpu.memory_space<semaphore_mem>> -> memref<1x!tpu.dma_semaphore, #tpu.memory_space<semaphore_mem>>
      %53 = tpu.memref_squeeze %52 : memref<1x!tpu.dma_semaphore, #tpu.memory_space<semaphore_mem>> -> memref<!tpu.dma_semaphore, #tpu.memory_space<semaphore_mem>>
      tpu.enqueue_dma source(%49 : memref<128xf32, #tpu.memory_space<any>>) target(%51 : memref<128xf32, #tpu.memory_space<vmem>>) target_semaphore(%53 : memref<!tpu.dma_semaphore, #tpu.memory_space<semaphore_mem>>)
      %c2_i32_27 = arith.constant 2 : i32
      %54 = arith.addi %35, %c2_i32_27 : i32
      %55 = arith.index_cast %54 : i32 to index
      %56 = memref.load %arg2[%55] : memref<16xi32, #tpu.memory_space<smem>>
      %c0_i32_28 = arith.constant 0 : i32
      %57 = tpu.memref_slice %arg3[%56, %c0_i32_28] : memref<64x128xf32, #tpu.memory_space<any>> -> memref<1x128xf32, #tpu.memory_space<any>>
      %58 = tpu.memref_squeeze %57 : memref<1x128xf32, #tpu.memory_space<any>> -> memref<128xf32, #tpu.memory_space<any>>
      %c0_i32_29 = arith.constant 0 : i32
      %59 = tpu.memref_slice %arg6[%32, %c2_i32_27, %c0_i32_29] : memref<2x8x128xf32, #tpu.memory_space<vmem>> -> memref<1x1x128xf32, #tpu.memory_space<vmem>>
      %60 = tpu.memref_squeeze %59 : memref<1x1x128xf32, #tpu.memory_space<vmem>> -> memref<128xf32, #tpu.memory_space<vmem>>
      %61 = tpu.memref_slice %arg7[%32] : memref<2x!tpu.dma_semaphore, #tpu.memory_space<semaphore_mem>> -> memref<1x!tpu.dma_semaphore, #tpu.memory_space<semaphore_mem>>
      %62 = tpu.memref_squeeze %61 : memref<1x!tpu.dma_semaphore, #tpu.memory_space<semaphore_mem>> -> memref<!tpu.dma_semaphore, #tpu.memory_space<semaphore_mem>>
      tpu.enqueue_dma source(%58 : memref<128xf32, #tpu.memory_space<any>>) target(%60 : memref<128xf32, #tpu.memory_space<vmem>>) target_semaphore(%62 : memref<!tpu.dma_semaphore, #tpu.memory_space<semaphore_mem>>)
      %c3_i32 = arith.constant 3 : i32
      %63 = arith.addi %35, %c3_i32 : i32
      %64 = arith.index_cast %63 : i32 to index
      %65 = memref.load %arg2[%64] : memref<16xi32, #tpu.memory_space<smem>>
      %c0_i32_30 = arith.constant 0 : i32
      %66 = tpu.memref_slice %arg3[%65, %c0_i32_30] : memref<64x128xf32, #tpu.memory_space<any>> -> memref<1x128xf32, #tpu.memory_space<any>>
      %67 = tpu.memref_squeeze %66 : memref<1x128xf32, #tpu.memory_space<any>> -> memref<128xf32, #tpu.memory_space<any>>
      %c0_i32_31 = arith.constant 0 : i32
      %68 = tpu.memref_slice %arg6[%32, %c3_i32, %c0_i32_31] : memref<2x8x128xf32, #tpu.memory_space<vmem>> -> memref<1x1x128xf32, #tpu.memory_space<vmem>>
      %69 = tpu.memref_squeeze %68 : memref<1x1x128xf32, #tpu.memory_space<vmem>> -> memref<128xf32, #tpu.memory_space<vmem>>
      %70 = tpu.memref_slice %arg7[%32] : memref<2x!tpu.dma_semaphore, #tpu.memory_space<semaphore_mem>> -> memref<1x!tpu.dma_semaphore, #tpu.memory_space<semaphore_mem>>
      %71 = tpu.memref_squeeze %70 : memref<1x!tpu.dma_semaphore, #tpu.memory_space<semaphore_mem>> -> memref<!tpu.dma_semaphore, #tpu.memory_space<semaphore_mem>>
      tpu.enqueue_dma source(%67 : memref<128xf32, #tpu.memory_space<any>>) target(%69 : memref<128xf32, #tpu.memory_space<vmem>>) target_semaphore(%71 : memref<!tpu.dma_semaphore, #tpu.memory_space<semaphore_mem>>)
      %c4_i32 = arith.constant 4 : i32
      %72 = arith.addi %35, %c4_i32 : i32
      %73 = arith.index_cast %72 : i32 to index
      %74 = memref.load %arg2[%73] : memref<16xi32, #tpu.memory_space<smem>>
      %c0_i32_32 = arith.constant 0 : i32
      %75 = tpu.memref_slice %arg3[%74, %c0_i32_32] : memref<64x128xf32, #tpu.memory_space<any>> -> memref<1x128xf32, #tpu.memory_space<any>>
      %76 = tpu.memref_squeeze %75 : memref<1x128xf32, #tpu.memory_space<any>> -> memref<128xf32, #tpu.memory_space<any>>
      %c0_i32_33 = arith.constant 0 : i32
      %77 = tpu.memref_slice %arg6[%32, %c4_i32, %c0_i32_33] : memref<2x8x128xf32, #tpu.memory_space<vmem>> -> memref<1x1x128xf32, #tpu.memory_space<vmem>>
      %78 = tpu.memref_squeeze %77 : memref<1x1x128xf32, #tpu.memory_space<vmem>> -> memref<128xf32, #tpu.memory_space<vmem>>
      %79 = tpu.memref_slice %arg7[%32] : memref<2x!tpu.dma_semaphore, #tpu.memory_space<semaphore_mem>> -> memref<1x!tpu.dma_semaphore, #tpu.memory_space<semaphore_mem>>
      %80 = tpu.memref_squeeze %79 : memref<1x!tpu.dma_semaphore, #tpu.memory_space<semaphore_mem>> -> memref<!tpu.dma_semaphore, #tpu.memory_space<semaphore_mem>>
      tpu.enqueue_dma source(%76 : memref<128xf32, #tpu.memory_space<any>>) target(%78 : memref<128xf32, #tpu.memory_space<vmem>>) target_semaphore(%80 : memref<!tpu.dma_semaphore, #tpu.memory_space<semaphore_mem>>)
      %c5_i32 = arith.constant 5 : i32
      %81 = arith.addi %35, %c5_i32 : i32
      %82 = arith.index_cast %81 : i32 to index
      %83 = memref.load %arg2[%82] : memref<16xi32, #tpu.memory_space<smem>>
      %c0_i32_34 = arith.constant 0 : i32
      %84 = tpu.memref_slice %arg3[%83, %c0_i32_34] : memref<64x128xf32, #tpu.memory_space<any>> -> memref<1x128xf32, #tpu.memory_space<any>>
      %85 = tpu.memref_squeeze %84 : memref<1x128xf32, #tpu.memory_space<any>> -> memref<128xf32, #tpu.memory_space<any>>
      %c0_i32_35 = arith.constant 0 : i32
      %86 = tpu.memref_slice %arg6[%32, %c5_i32, %c0_i32_35] : memref<2x8x128xf32, #tpu.memory_space<vmem>> -> memref<1x1x128xf32, #tpu.memory_space<vmem>>
      %87 = tpu.memref_squeeze %86 : memref<1x1x128xf32, #tpu.memory_space<vmem>> -> memref<128xf32, #tpu.memory_space<vmem>>
      %88 = tpu.memref_slice %arg7[%32] : memref<2x!tpu.dma_semaphore, #tpu.memory_space<semaphore_mem>> -> memref<1x!tpu.dma_semaphore, #tpu.memory_space<semaphore_mem>>
      %89 = tpu.memref_squeeze %88 : memref<1x!tpu.dma_semaphore, #tpu.memory_space<semaphore_mem>> -> memref<!tpu.dma_semaphore, #tpu.memory_space<semaphore_mem>>
      tpu.enqueue_dma source(%85 : memref<128xf32, #tpu.memory_space<any>>) target(%87 : memref<128xf32, #tpu.memory_space<vmem>>) target_semaphore(%89 : memref<!tpu.dma_semaphore, #tpu.memory_space<semaphore_mem>>)
      %c6_i32 = arith.constant 6 : i32
      %90 = arith.addi %35, %c6_i32 : i32
      %91 = arith.index_cast %90 : i32 to index
      %92 = memref.load %arg2[%91] : memref<16xi32, #tpu.memory_space<smem>>
      %c0_i32_36 = arith.constant 0 : i32
      %93 = tpu.memref_slice %arg3[%92, %c0_i32_36] : memref<64x128xf32, #tpu.memory_space<any>> -> memref<1x128xf32, #tpu.memory_space<any>>
      %94 = tpu.memref_squeeze %93 : memref<1x128xf32, #tpu.memory_space<any>> -> memref<128xf32, #tpu.memory_space<any>>
      %c0_i32_37 = arith.constant 0 : i32
      %95 = tpu.memref_slice %arg6[%32, %c6_i32, %c0_i32_37] : memref<2x8x128xf32, #tpu.memory_space<vmem>> -> memref<1x1x128xf32, #tpu.memory_space<vmem>>
      %96 = tpu.memref_squeeze %95 : memref<1x1x128xf32, #tpu.memory_space<vmem>> -> memref<128xf32, #tpu.memory_space<vmem>>
      %97 = tpu.memref_slice %arg7[%32] : memref<2x!tpu.dma_semaphore, #tpu.memory_space<semaphore_mem>> -> memref<1x!tpu.dma_semaphore, #tpu.memory_space<semaphore_mem>>
      %98 = tpu.memref_squeeze %97 : memref<1x!tpu.dma_semaphore, #tpu.memory_space<semaphore_mem>> -> memref<!tpu.dma_semaphore, #tpu.memory_space<semaphore_mem>>
      tpu.enqueue_dma source(%94 : memref<128xf32, #tpu.memory_space<any>>) target(%96 : memref<128xf32, #tpu.memory_space<vmem>>) target_semaphore(%98 : memref<!tpu.dma_semaphore, #tpu.memory_space<semaphore_mem>>)
      %c7_i32 = arith.constant 7 : i32
      %99 = arith.addi %35, %c7_i32 : i32
      %100 = arith.index_cast %99 : i32 to index
      %101 = memref.load %arg2[%100] : memref<16xi32, #tpu.memory_space<smem>>
      %c0_i32_38 = arith.constant 0 : i32
      %102 = tpu.memref_slice %arg3[%101, %c0_i32_38] : memref<64x128xf32, #tpu.memory_space<any>> -> memref<1x128xf32, #tpu.memory_space<any>>
      %103 = tpu.memref_squeeze %102 : memref<1x128xf32, #tpu.memory_space<any>> -> memref<128xf32, #tpu.memory_space<any>>
      %c0_i32_39 = arith.constant 0 : i32
      %104 = tpu.memref_slice %arg6[%32, %c7_i32, %c0_i32_39] : memref<2x8x128xf32, #tpu.memory_space<vmem>> -> memref<1x1x128xf32, #tpu.memory_space<vmem>>
      %105 = tpu.memref_squeeze %104 : memref<1x1x128xf32, #tpu.memory_space<vmem>> -> memref<128xf32, #tpu.memory_space<vmem>>
      %106 = tpu.memref_slice %arg7[%32] : memref<2x!tpu.dma_semaphore, #tpu.memory_space<semaphore_mem>> -> memref<1x!tpu.dma_semaphore, #tpu.memory_space<semaphore_mem>>
      %107 = tpu.memref_squeeze %106 : memref<1x!tpu.dma_semaphore, #tpu.memory_space<semaphore_mem>> -> memref<!tpu.dma_semaphore, #tpu.memory_space<semaphore_mem>>
      tpu.enqueue_dma source(%103 : memref<128xf32, #tpu.memory_space<any>>) target(%105 : memref<128xf32, #tpu.memory_space<vmem>>) target_semaphore(%107 : memref<!tpu.dma_semaphore, #tpu.memory_space<semaphore_mem>>)
      %c8_i32_40 = arith.constant 8 : i32
    } else {
    }
    %c0_i32_8 = arith.constant 0 : i32
    %c0_i32_9 = arith.constant 0 : i32
    %17 = tpu.memref_slice %arg6[%9, %c0_i32_8, %c0_i32_9] : memref<2x8x128xf32, #tpu.memory_space<vmem>> -> memref<1x8x128xf32, #tpu.memory_space<vmem>>
    %18 = tpu.memref_squeeze %17 : memref<1x8x128xf32, #tpu.memory_space<vmem>> -> memref<8x128xf32, #tpu.memory_space<vmem>>
    %c0_i32_10 = arith.constant 0 : i32
    %c0_i32_11 = arith.constant 0 : i32
    %19 = tpu.memref_slice %arg6[%9, %c0_i32_10, %c0_i32_11] : memref<2x8x128xf32, #tpu.memory_space<vmem>> -> memref<1x8x128xf32, #tpu.memory_space<vmem>>
    %20 = tpu.memref_squeeze %19 : memref<1x8x128xf32, #tpu.memory_space<vmem>> -> memref<8x128xf32, #tpu.memory_space<vmem>>
    %21 = tpu.memref_slice %arg7[%9] : memref<2x!tpu.dma_semaphore, #tpu.memory_space<semaphore_mem>> -> memref<1x!tpu.dma_semaphore, #tpu.memory_space<semaphore_mem>>
    %22 = tpu.memref_squeeze %21 : memref<1x!tpu.dma_semaphore, #tpu.memory_space<semaphore_mem>> -> memref<!tpu.dma_semaphore, #tpu.memory_space<semaphore_mem>>
    tpu.wait_dma2 semaphore(%22 : memref<!tpu.dma_semaphore, #tpu.memory_space<semaphore_mem>>) src(%18 : memref<8x128xf32, #tpu.memory_space<vmem>>) dst(%20 : memref<8x128xf32, #tpu.memory_space<vmem>>)
    %23 = arith.index_cast %9 : i32 to index
    %c0 = arith.constant 0 : index
    %c0_12 = arith.constant 0 : index
    %24 = vector.load %arg6[%23, %c0, %c0_12] : memref<2x8x128xf32, #tpu.memory_space<vmem>>, vector<1x8x128xf32>
    %25 = vector.shape_cast %24 : vector<1x8x128xf32> to vector<8x128xf32>
    %c0_13 = arith.constant 0 : index
    %c0_14 = arith.constant 0 : index
    %26 = vector.load %arg4[%c0_13, %c0_14] : memref<8x128xf32, #tpu.memory_space<vmem>>, vector<8x128xf32>
    %27 = arith.addf %25, %26 : vector<8x128xf32>
    %c0_15 = arith.constant 0 : index
    %c0_16 = arith.constant 0 : index
    %c0_17 = arith.constant 0 : index
    %28 = vector.load %arg5[%c0_15, %c0_16, %c0_17] : memref<1x8x128xf32, #tpu.memory_space<vmem>>, vector<1x8x128xf32>
    %29 = vector.shape_cast %28 : vector<1x8x128xf32> to vector<8x128xf32>
    %30 = vector.shape_cast %27 : vector<8x128xf32> to vector<1x8x128xf32>
    tpu.vector_store %arg5[%c0_15, %c0_16, %c0_17], %30 {strides = array<i32>} : memref<1x8x128xf32, #tpu.memory_space<vmem>>, vector<1x8x128xf32>,
    return
  }
  func.func @transform_1(%arg0: i32, %arg1: i32, %arg2: memref<16xi32, #tpu.memory_space<smem>>) -> (i32, i32) {
    %c0_i32 = arith.constant 0 : i32
    %c0_i32_0 = arith.constant 0 : i32
    return %arg0, %c0_i32 : i32, i32
  }
  func.func @transform_2(%arg0: i32, %arg1: i32, %arg2: memref<16xi32, #tpu.memory_space<smem>>) -> (i32, i32, i32) {
    %c0_i32 = arith.constant 0 : i32
    %c0_i32_0 = arith.constant 0 : i32
    return %arg1, %arg0, %c0_i32 : i32, i32, i32
  }
}

</mosaic_0001>

<llo_original>
// kernel: tpu_custom_call.1
$region0: #{tpu_custom_call.1}
  #allocation0 [shape = 'u32[]', space=smem, size = 0x4, offset = 0x4, fixed_abs, tag = 'smem constant byte address 0x4 - core index']
  #allocation1 [shape = 'u32[72,128]{1,0:T(1,128)}', space=vmem, size = 0x9000, scoped, tag = 'internal scratch']
  #allocation2 [shape = 'f32[2,8,128]{2,1,0:T(8,128)}', space=vmem, size = 0x2000, scoped, tag = 'scratch operand']
  #allocation3 [shape = 's32[2]{0}', space=sflag, size = 0x8, scoped, tag = 'scratch operand']
  #allocation4 [shape = 's32[1]{0}', space=sflag, size = 0x4, scoped, tag = 'scoped memory for tpu_custom_call.1']
  #allocation5 [shape = 'u8[512]{0}', space=smem, size = 0x200, scoped, tag = 'prefetched SMEM operand 0']
  #allocation10 [shape = 's32[]', space=sflag, size = 0x4, offset = 0, fixed_abs, tag = 'sflag constant byte address 0x0 - dummy sync flag']
  #allocation11 [shape = 's32[]', space=sflag, size = 0x4, offset = 0, fixed_abs, tag = 'sflag constant byte address 0x0 - dummy sync flag']
  #allocation12 [shape = 'u32[]', space=smem, size = 0x4, offset = 0x44, fixed_abs, tag = 'smem constant byte address 0x44 - assertion arg 0']
  #allocation13 [shape = 'u32[]', space=smem, size = 0x4, offset = 0x48, fixed_abs, tag = 'smem constant byte address 0x48 - assertion arg 1']
  #allocation14 [shape = 's32[]', space=sflag, size = 0x4, offset = 0, fixed_abs, tag = 'sflag constant byte address 0x0 - dummy sync flag']
  #allocation15 [shape = 's32[]', space=sflag, size = 0x4, offset = 0, fixed_abs, tag = 'sflag constant byte address 0x0 - dummy sync flag']
  #allocation16 [shape = 's32[]', space=sflag, size = 0x4, offset = 0, fixed_abs, tag = 'sflag constant byte address 0x0 - dummy sync flag']
  #allocation17 [shape = 's32[]', space=sflag, size = 0x4, offset = 0, fixed_abs, tag = 'sflag constant byte address 0x0 - dummy sync flag']
  #allocation18 [shape = 's32[]', space=sflag, size = 0x4, offset = 0, fixed_abs, tag = 'sflag constant byte address 0x0 - dummy sync flag']
  #allocation19 [shape = 's32[]', space=sflag, size = 0x4, offset = 0, fixed_abs, tag = 'sflag constant byte address 0x0 - dummy sync flag']
  #allocation20 [shape = 's32[]', space=sflag, size = 0x4, offset = 0, fixed_abs, tag = 'sflag constant byte address 0x0 - dummy sync flag']
  #allocation21 [shape = 's32[]', space=sflag, size = 0x4, offset = 0, fixed_abs, tag = 'sflag constant byte address 0x0 - dummy sync flag']
  #allocation22 [shape = 's32[]', space=sflag, size = 0x4, offset = 0, fixed_abs, tag = 'sflag constant byte address 0x0 - dummy sync flag']
  #allocation23 [shape = 's32[]', space=sflag, size = 0x4, offset = 0, fixed_abs, tag = 'sflag constant byte address 0x0 - dummy sync flag']
  #allocation24 [shape = 's32[]', space=sflag, size = 0x4, offset = 0, fixed_abs, tag = 'sflag constant byte address 0x0 - dummy sync flag']
  #allocation25 [shape = 's32[]', space=sflag, size = 0x4, offset = 0, fixed_abs, tag = 'sflag constant byte address 0x0 - dummy sync flag']
  #allocation26 [shape = 's32[]', space=sflag, size = 0x4, offset = 0, fixed_abs, tag = 'sflag constant byte address 0x0 - dummy sync flag']
  #allocation27 [shape = 's32[]', space=sflag, size = 0x4, offset = 0, fixed_abs, tag = 'sflag constant byte address 0x0 - dummy sync flag']
  #allocation28 [shape = 's32[]', space=sflag, size = 0x4, offset = 0, fixed_abs, tag = 'sflag constant byte address 0x0 - dummy sync flag']
  #allocation29 [shape = 's32[]', space=sflag, size = 0x4, offset = 0, fixed_abs, tag = 'sflag constant byte address 0x0 - dummy sync flag']
  #allocation30 [shape = 's32[]', space=sflag, size = 0x4, offset = 0, fixed_abs, tag = 'sflag constant byte address 0x0 - dummy sync flag']
  #allocation31 [shape = 's32[]', space=sflag, size = 0x4, offset = 0, fixed_abs, tag = 'sflag constant byte address 0x0 - dummy sync flag']
  #allocation32 [shape = 's32[]', space=sflag, size = 0x4, offset = 0, fixed_abs, tag = 'sflag constant byte address 0x0 - dummy sync flag']
  #allocation33 [shape = 's32[]', space=sflag, size = 0x4, offset = 0, fixed_abs, tag = 'sflag constant byte address 0x0 - dummy sync flag']
  #allocation34 [shape = 's32[]', space=sflag, size = 0x4, offset = 0, fixed_abs, tag = 'sflag constant byte address 0x0 - dummy sync flag']
  #allocation35 [shape = 's32[]', space=sflag, size = 0x4, offset = 0, fixed_abs, tag = 'sflag constant byte address 0x0 - dummy sync flag']
  #allocation36 [shape = 's32[]', space=sflag, size = 0x4, offset = 0, fixed_abs, tag = 'sflag constant byte address 0x0 - dummy sync flag']
  #allocation37 [shape = 's32[]', space=sflag, size = 0x4, offset = 0, fixed_abs, tag = 'sflag constant byte address 0x0 - dummy sync flag']
  #allocation38 [shape = 's32[]', space=sflag, size = 0x4, offset = 0, fixed_abs, tag = 'sflag constant byte address 0x0 - dummy sync flag']
  #allocation39 [shape = 's32[]', space=sflag, size = 0x4, offset = 0, fixed_abs, tag = 'sflag constant byte address 0x0 - dummy sync flag']
  #allocation40 [shape = 's32[]', space=sflag, size = 0x4, offset = 0, fixed_abs, tag = 'sflag constant byte address 0x0 - dummy sync flag']
  #allocation41 [shape = 's32[]', space=sflag, size = 0x4, offset = 0, fixed_abs, tag = 'sflag constant byte address 0x0 - dummy sync flag']
  #allocation42 [shape = 's32[]', space=sflag, size = 0x4, offset = 0, fixed_abs, tag = 'sflag constant byte address 0x0 - dummy sync flag']
  #allocation43 [shape = 's32[]', space=sflag, size = 0x4, offset = 0, fixed_abs, tag = 'sflag constant byte address 0x0 - dummy sync flag']
  %s0 = inlined_call_operand.hbm [shape: s32[16], index: 0, kind: input, shape index: {}]
  %s1 = inlined_call_operand.hbm [shape: f32[64,128], index: 1, kind: input, shape index: {}]
  %s2 = inlined_call_operand.hbm [shape: f32[16,128], index: 2, kind: input, shape index: {}]
  %s3 = inlined_call_operand.hbm [shape: f32[2,8,128], index: 3, kind: output, shape index: {}]
  %s4 = sld [smem:[#allocation0]]
  $region113: #{tpu_custom_call.1} parent=0
    _
  %s6 = ssub.s32 1, %s4
  %s7 = scalar_select 0, %s6, %s4
  %s9 = sshll.u32 %s0, 4
  %s10 = int_to_ptr.hbm [resolvable:$true] %s9
  %12 = dma.hbm_to_smem %s10, 16, [#allocation5], [#allocation4]
  %14 = dma.done [#allocation4], 16
  %15 = sfence
  $region1: #{tpu_custom_call.1} parent=0
    #allocation6 [shape = 'u8[4096]{0}', space=vmem, size = 0x1000, scoped, tag = 'input window, operand 2, single buffered']
    #allocation7 [shape = 's32[2]{0}', space=sflag, size = 0x8, scoped, tag = 'scoped memory for tpu_custom_call.1']
    #allocation8 [shape = 's32[2]{0}', space=sflag, size = 0x8, scoped, tag = 'scoped memory for tpu_custom_call.1']
    #allocation9 [shape = 'u8[8192]{0}', space=vmem, size = 0x2000, scoped, tag = 'output window, operand 0']
    %16 = vsyncpa [#allocation7], 0
    %17 = vsyncpa [#allocation8], 0
    %s18 = scalar_lea.sflag [#allocation8], 1
    %19 = vsyncpa %s18, 0
    loop: start=0, step=1, limit=4
    $region2: #{tpu_custom_call.1} parent=1 // loop_pre_header
      _
    $region3: #{tpu_custom_call.1} parent=1 // loop_header
      %s21 = sphi 0, %s25
      %p22 = scmp.ge.s32.totalorder %s21, 4
      %s28 = sphi 0, %s40
      %s29 = sphi 0, %s36
      %s30 = sphi 0, %s28
      %s31 = sphi 0, %s29
      %s32 = sphi 0, %s30
      %s33 = sphi 0, %s31
      %s43 = sphi 0, %s45
      %s46 = sphi 0, %s43
      %s47 = sphi 0, %s46
      %s63 = sphi 0, %s47
      %s71 = sphi 0, %s73
      %s74 = sphi 0, %s71
      %s75 = sphi 0, %s74
      %s91 = sphi 0, %s75
    $region4: #{tpu_custom_call.1} parent=1 // loop_header_branch
      %24 = sbr.rel (%p22) target = $region8
    $region5: #{tpu_custom_call.1} parent=1 // loop_body
      %s26 = ssub.s32 %s21, 1
      %s27 = ssub.s32 %s21, 2
      %s34 = sadd.s32 1, %s29
      %p35 = scmp.ge.s32.totalorder %s34, 2
      %s36 = scalar_select %p35, 0, %s34
      %s37 = sadd.s32 1, %s28
      %s38 = scalar_select %p35, %s37, %s28
      %p39 = scmp.ge.s32.totalorder %s38, 1
      %s40 = scalar_select %p39, 0, %s38
      %s41 = ssub.s32 %s28, %s40
      %p42 = scmp.eq.s32.totalorder %s41, 0
      %s44 = sadd.s32 %s43, 1
      %s45 = scalar_select %p42, %s43, %s44
      %p48 = pneg %p42
      %p49 = scmp.eq.s32.totalorder %s21, 1
      %p50 = por %p48, %p49
      %p51 = scmp.ne.s32.totalorder %s43, %s46
      %p52 = scmp.eq.s32.totalorder %s21, 0
      %p53 = por %p51, %p52
      %p54 = scmp.ne.s32.totalorder %s43, %s46
      %p55 = scmp.eq.s32.totalorder %s26, 1
      %p56 = por %p54, %p55
      %p57 = scmp.ne.s32.totalorder %s46, %s47
      %p58 = scmp.eq.s32.totalorder %s26, 0
      %p59 = por %p57, %p58
      %p60 = scmp.ne.s32.totalorder %s46, %s47
      %p61 = scmp.eq.s32.totalorder %s27, 1
      %p62 = por %p60, %p61
      %p64 = scmp.ne.s32.totalorder %s47, %s63
      %p65 = scmp.eq.s32.totalorder %s27, 0
      %p66 = por %p64, %p65
      %s67 = ssub.s32 %s29, %s36
      %s68 = ssub.s32 %s28, %s40
      %s69 = sor.u32 %s67, %s68
      %p70 = scmp.eq.s32.totalorder %s69, 0
      %s72 = sadd.s32 %s71, 1
      %s73 = scalar_select %p70, %s71, %s72
      %p76 = pneg %p70
      %p77 = scmp.eq.s32.totalorder %s21, 1
      %p78 = por %p76, %p77
      %p79 = scmp.ne.s32.totalorder %s71, %s74
      %p80 = scmp.eq.s32.totalorder %s21, 0
      %p81 = por %p79, %p80
      %p82 = scmp.ne.s32.totalorder %s71, %s74
      %p83 = scmp.eq.s32.totalorder %s26, 1
      %p84 = por %p82, %p83
      %p85 = scmp.ne.s32.totalorder %s74, %s75
      %p86 = scmp.eq.s32.totalorder %s26, 0
      %p87 = por %p85, %p86
      %p88 = scmp.ne.s32.totalorder %s74, %s75
      %p89 = scmp.eq.s32.totalorder %s27, 1
      %p90 = por %p88, %p89
      %p92 = scmp.ne.s32.totalorder %s75, %s91
      %p93 = scmp.eq.s32.totalorder %s27, 0
      %p94 = por %p92, %p93
      %p95 = scmp.le.s32.totalorder 1, %s21
      %p96 = scmp.lt.s32.totalorder %s21, 3
      %p97 = pnand %p95, %p96
      %p98 = pneg %p97
      // Predicated region
      $region9: #{tpu_custom_call.1} parent=5 // pred_check
        _
      $region10: #{tpu_custom_call.1} parent=5 // pred_check_branch
        %100 = sbr.rel (%p97) target = $region12
      $region11: #{tpu_custom_call.1} parent=5 // pred_region
        %s101 = ssub.s32 %s21, 1
        // Predicated region
        $region13: #{tpu_custom_call.1} parent=11 // pred_check
          %p102 = pneg %p59
        $region14: #{tpu_custom_call.1} parent=11 // pred_check_branch
          %104 = sbr.rel (%p102) target = $region16
        $region15: #{tpu_custom_call.1} parent=11 // pred_region
          %106 = vsyncadd [#allocation7], 0
          %s107 = smul.addr %s30, 8
          %s108 = scalar_lea.hbm %s2, %s107
          %s110 = sshll.u32 %s108, 4
          %s111 = int_to_ptr.hbm [resolvable:$true] %s110
          %s112 = sshll.u32 [#allocation6], 4
          %s113 = int_to_ptr.vmem [resolvable:$true] %s112
          %115 = dma.hbm_to_vmem [thread:$0]  %s111, 128, %s113, [#allocation7]
        $region16: #{tpu_custom_call.1} parent=11 // pred_fallthru
          _
      $region12: #{tpu_custom_call.1} parent=5 // pred_fallthru
        _
      %p116 = scmp.lt.s32.totalorder %s21, 2
      // Predicated region
      $region17: #{tpu_custom_call.1} parent=5 // pred_check
        %p117 = pneg %p116
      $region18: #{tpu_custom_call.1} parent=5 // pred_check_branch
        %119 = sbr.rel (%p117) target = $region20
      $region19: #{tpu_custom_call.1} parent=5 // pred_region
        _
      $region20: #{tpu_custom_call.1} parent=5 // pred_fallthru
        _
      %p120 = scmp.le.s32.totalorder 1, %s21
      %p121 = scmp.lt.s32.totalorder %s21, 3
      %p122 = pnand %p120, %p121
      %p123 = pneg %p122
      // Predicated region
      $region21: #{tpu_custom_call.1} parent=5 // pred_check
        _
      $region22: #{tpu_custom_call.1} parent=5 // pred_check_branch
        %125 = sbr.rel (%p122) target = $region24
      $region23: #{tpu_custom_call.1} parent=5 // pred_region
        %s126 = ssub.s32 %s21, 1
        // Predicated region
        $region25: #{tpu_custom_call.1} parent=23 // pred_check
          %p127 = pneg %p59
        $region26: #{tpu_custom_call.1} parent=23 // pred_check_branch
          %129 = sbr.rel (%p127) target = $region28
        $region27: #{tpu_custom_call.1} parent=23 // pred_region
          %131 = dma.done [#allocation7], 128
        $region28: #{tpu_custom_call.1} parent=23 // pred_fallthru
          _
        %p132 = pneg %p59
        %p133 = pneg %p56
        %p134 = pneg %p87
        %p135 = pneg %p84
        %s136 = sand.u32 %s74, 1
        %s137 = scalar_lea.sflag [#allocation8], %s136
        %s138 = sand.u32 %s74, 1
        %s139 = smul.addr %s138, 8
        %s140 = scalar_lea.vmem [#allocation9], %s139
        %p141 = scmp.lt.s32.totalorder %s31, 0
        %s142 = ssub.s32 0, %s31
        %s143 = scalar_select %p141, %s142, %s31
        %s144 = sand.u32 %s143, 1
        %s145 = ssub.s32 0, %s144
        %s146 = scalar_select %p141, %s145, %s144
        %p147 = scmp.ne.s32.totalorder %s146, 0
        %p148 = scmp.lt.s32.totalorder %s146, 0
        %p149 = pnand %p148, %p147
        %p150 = pneg %p149
        %s151 = sadd.s32 %s146, 2
        %s152 = scalar_select %p150, %s151, %s146
        %p153 = scmp.eq.s32.totalorder %s31, 0
        // Predicated region
        $region29: #{tpu_custom_call.1} parent=23 // pred_check
          %p154 = pneg %p153
        $region30: #{tpu_custom_call.1} parent=23 // pred_check_branch
          %156 = sbr.rel (%p154) target = $region32
        $region31: #{tpu_custom_call.1} parent=23 // pred_region
          %s157 = smul.u32 %s30, 8
          %s158 = sld [smem:[#allocation5 + %s157]]
          %s159 = scalar_lea.hbm %s1, %s158
          // Predicated region
          $region33: #{tpu_custom_call.1} parent=31 // pred_check
            _
          $region34: #{tpu_custom_call.1} parent=31 // pred_check_branch
            %161 = sbr.rel target = $region36
          $region35: #{tpu_custom_call.1} parent=31 // pred_region
            %162 = sst [smem:[#allocation12]] [#allocation11]
            %163 = sst [smem:[#allocation13]] [#allocation10]
          $region36: #{tpu_custom_call.1} parent=31 // pred_fallthru
            _
          %165 = shalt.err (0)
          %s167 = sshll.u32 %s159, 4
          %s168 = int_to_ptr.hbm [resolvable:$true] %s167
          %s169 = sshll.u32 [#allocation2], 4
          %s170 = int_to_ptr.vmem [resolvable:$true] %s169
          %172 = dma.hbm_to_vmem [thread:$0]  %s168, 16, %s170, [#allocation3]
          %s173 = sadd.s32 %s157, 1
          %s174 = sld [smem:[#allocation5 + %s173]]
          %s175 = scalar_lea.hbm %s1, %s174
          %s176 = scalar_lea.vmem [#allocation2], 1
          // Predicated region
          $region37: #{tpu_custom_call.1} parent=31 // pred_check
            _
          $region38: #{tpu_custom_call.1} parent=31 // pred_check_branch
            %178 = sbr.rel target = $region40
          $region39: #{tpu_custom_call.1} parent=31 // pred_region
            %179 = sst [smem:[#allocation12]] [#allocation15]
            %180 = sst [smem:[#allocation13]] [#allocation14]
          $region40: #{tpu_custom_call.1} parent=31 // pred_fallthru
            _
          %182 = shalt.err (0)
          %s184 = sshll.u32 %s175, 4
          %s185 = int_to_ptr.hbm [resolvable:$true] %s184
          %s186 = sshll.u32 %s176, 4
          %s187 = int_to_ptr.vmem [resolvable:$true] %s186
          %189 = dma.hbm_to_vmem [thread:$0]  %s185, 16, %s187, [#allocation3]
          %s190 = sadd.s32 %s157, 2
          %s191 = sld [smem:[#allocation5 + %s190]]
          %s192 = scalar_lea.hbm %s1, %s191
          %s193 = scalar_lea.vmem [#allocation2], 2
          // Predicated region
          $region41: #{tpu_custom_call.1} parent=31 // pred_check
            _
          $region42: #{tpu_custom_call.1} parent=31 // pred_check_branch
            %195 = sbr.rel target = $region44
          $region43: #{tpu_custom_call.1} parent=31 // pred_region
            %196 = sst [smem:[#allocation12]] [#allocation17]
            %197 = sst [smem:[#allocation13]] [#allocation16]
          $region44: #{tpu_custom_call.1} parent=31 // pred_fallthru
            _
          %199 = shalt.err (0)
          %s201 = sshll.u32 %s192, 4
          %s202 = int_to_ptr.hbm [resolvable:$true] %s201
          %s203 = sshll.u32 %s193, 4
          %s204 = int_to_ptr.vmem [resolvable:$true] %s203
          %206 = dma.hbm_to_vmem [thread:$0]  %s202, 16, %s204, [#allocation3]
          %s207 = sadd.s32 %s157, 3
          %s208 = sld [smem:[#allocation5 + %s207]]
          %s209 = scalar_lea.hbm %s1, %s208
          %s210 = scalar_lea.vmem [#allocation2], 3
          // Predicated region
          $region45: #{tpu_custom_call.1} parent=31 // pred_check
            _
          $region46: #{tpu_custom_call.1} parent=31 // pred_check_branch
            %212 = sbr.rel target = $region48
          $region47: #{tpu_custom_call.1} parent=31 // pred_region
            %213 = sst [smem:[#allocation12]] [#allocation19]
            %214 = sst [smem:[#allocation13]] [#allocation18]
          $region48: #{tpu_custom_call.1} parent=31 // pred_fallthru
            _
          %216 = shalt.err (0)
          %s218 = sshll.u32 %s209, 4
          %s219 = int_to_ptr.hbm [resolvable:$true] %s218
          %s220 = sshll.u32 %s210, 4
          %s221 = int_to_ptr.vmem [resolvable:$true] %s220
          %223 = dma.hbm_to_vmem [thread:$0]  %s219, 16, %s221, [#allocation3]
          %s224 = sadd.s32 %s157, 4
          %s225 = sld [smem:[#allocation5 + %s224]]
          %s226 = scalar_lea.hbm %s1, %s225
          %s227 = scalar_lea.vmem [#allocation2], 4
          // Predicated region
          $region49: #{tpu_custom_call.1} parent=31 // pred_check
            _
          $region50: #{tpu_custom_call.1} parent=31 // pred_check_branch
            %229 = sbr.rel target = $region52
          $region51: #{tpu_custom_call.1} parent=31 // pred_region
            %230 = sst [smem:[#allocation12]] [#allocation21]
            %231 = sst [smem:[#allocation13]] [#allocation20]
          $region52: #{tpu_custom_call.1} parent=31 // pred_fallthru
            _
          %233 = shalt.err (0)
          %s235 = sshll.u32 %s226, 4
          %s236 = int_to_ptr.hbm [resolvable:$true] %s235
          %s237 = sshll.u32 %s227, 4
          %s238 = int_to_ptr.vmem [resolvable:$true] %s237
          %240 = dma.hbm_to_vmem [thread:$0]  %s236, 16, %s238, [#allocation3]
          %s241 = sadd.s32 %s157, 5
          %s242 = sld [smem:[#allocation5 + %s241]]
          %s243 = scalar_lea.hbm %s1, %s242
          %s244 = scalar_lea.vmem [#allocation2], 5
          // Predicated region
          $region53: #{tpu_custom_call.1} parent=31 // pred_check
            _
          $region54: #{tpu_custom_call.1} parent=31 // pred_check_branch
            %246 = sbr.rel target = $region56
          $region55: #{tpu_custom_call.1} parent=31 // pred_region
            %247 = sst [smem:[#allocation12]] [#allocation23]
            %248 = sst [smem:[#allocation13]] [#allocation22]
          $region56: #{tpu_custom_call.1} parent=31 // pred_fallthru
            _
          %250 = shalt.err (0)
          %s252 = sshll.u32 %s243, 4
          %s253 = int_to_ptr.hbm [resolvable:$true] %s252
          %s254 = sshll.u32 %s244, 4
          %s255 = int_to_ptr.vmem [resolvable:$true] %s254
          %257 = dma.hbm_to_vmem [thread:$0]  %s253, 16, %s255, [#allocation3]
          %s258 = sadd.s32 %s157, 6
          %s259 = sld [smem:[#allocation5 + %s258]]
          %s260 = scalar_lea.hbm %s1, %s259
          %s261 = scalar_lea.vmem [#allocation2], 6
          // Predicated region
          $region57: #{tpu_custom_call.1} parent=31 // pred_check
            _
          $region58: #{tpu_custom_call.1} parent=31 // pred_check_branch
            %263 = sbr.rel target = $region60
          $region59: #{tpu_custom_call.1} parent=31 // pred_region
            %264 = sst [smem:[#allocation12]] [#allocation25]
            %265 = sst [smem:[#allocation13]] [#allocation24]
          $region60: #{tpu_custom_call.1} parent=31 // pred_fallthru
            _
          %267 = shalt.err (0)
          %s269 = sshll.u32 %s260, 4
          %s270 = int_to_ptr.hbm [resolvable:$true] %s269
          %s271 = sshll.u32 %s261, 4
          %s272 = int_to_ptr.vmem [resolvable:$true] %s271
          %274 = dma.hbm_to_vmem [thread:$0]  %s270, 16, %s272, [#allocation3]
          %s275 = sadd.s32 %s157, 7
          %s276 = sld [smem:[#allocation5 + %s275]]
          %s277 = scalar_lea.hbm %s1, %s276
          %s278 = scalar_lea.vmem [#allocation2], 7
          // Predicated region
          $region61: #{tpu_custom_call.1} parent=31 // pred_check
            _
          $region62: #{tpu_custom_call.1} parent=31 // pred_check_branch
            %280 = sbr.rel target = $region64
          $region63: #{tpu_custom_call.1} parent=31 // pred_region
            %281 = sst [smem:[#allocation12]] [#allocation27]
            %282 = sst [smem:[#allocation13]] [#allocation26]
          $region64: #{tpu_custom_call.1} parent=31 // pred_fallthru
            _
          %284 = shalt.err (0)
          %s286 = sshll.u32 %s277, 4
          %s287 = int_to_ptr.hbm [resolvable:$true] %s286
          %s288 = sshll.u32 %s278, 4
          %s289 = int_to_ptr.vmem [resolvable:$true] %s288
          %291 = dma.hbm_to_vmem [thread:$0]  %s287, 16, %s289, [#allocation3]
        $region32: #{tpu_custom_call.1} parent=23 // pred_fallthru
          _
        %s292 = sadd.s32 %s31, 1
        %p293 = scmp.lt.s32.totalorder %s292, 2
        // Predicated region
        $region65: #{tpu_custom_call.1} parent=23 // pred_check
          %p294 = pneg %p293
        $region66: #{tpu_custom_call.1} parent=23 // pred_check_branch
          %296 = sbr.rel (%p294) target = $region68
        $region67: #{tpu_custom_call.1} parent=23 // pred_region
          %s297 = ssub.s32 1, %s152
          %s298 = smul.u32 %s292, 8
          %s299 = smul.u32 %s30, 8
          %s300 = sadd.s32 %s298, %s299
          %s301 = sld [smem:[#allocation5 + %s300]]
          %s302 = scalar_lea.hbm %s1, %s301
          %s303 = smul.u32 %s297, 8
          %s304 = scalar_lea.vmem [#allocation2], %s303
          %s305 = scalar_lea.sflag [#allocation3], %s297
          // Predicated region
          $region69: #{tpu_custom_call.1} parent=67 // pred_check
            _
          $region70: #{tpu_custom_call.1} parent=67 // pred_check_branch
            %307 = sbr.rel target = $region72
          $region71: #{tpu_custom_call.1} parent=67 // pred_region
            %308 = sst [smem:[#allocation12]] [#allocation29]
            %309 = sst [smem:[#allocation13]] [#allocation28]
          $region72: #{tpu_custom_call.1} parent=67 // pred_fallthru
            _
          %311 = shalt.err (0)
          %s313 = sshll.u32 %s302, 4
          %s314 = int_to_ptr.hbm [resolvable:$true] %s313
          %s315 = sshll.u32 %s304, 4
          %s316 = int_to_ptr.vmem [resolvable:$true] %s315
          %318 = dma.hbm_to_vmem [thread:$0]  %s314, 16, %s316, %s305
          %s319 = sadd.s32 %s300, 1
          %s320 = sld [smem:[#allocation5 + %s319]]
          %s321 = scalar_lea.hbm %s1, %s320
          %s322 = sadd.s32 1, %s303
          %s323 = scalar_lea.vmem [#allocation2], %s322
          // Predicated region
          $region73: #{tpu_custom_call.1} parent=67 // pred_check
            _
          $region74: #{tpu_custom_call.1} parent=67 // pred_check_branch
            %325 = sbr.rel target = $region76
          $region75: #{tpu_custom_call.1} parent=67 // pred_region
            %326 = sst [smem:[#allocation12]] [#allocation31]
            %327 = sst [smem:[#allocation13]] [#allocation30]
          $region76: #{tpu_custom_call.1} parent=67 // pred_fallthru
            _
          %329 = shalt.err (0)
          %s331 = sshll.u32 %s321, 4
          %s332 = int_to_ptr.hbm [resolvable:$true] %s331
          %s333 = sshll.u32 %s323, 4
          %s334 = int_to_ptr.vmem [resolvable:$true] %s333
          %336 = dma.hbm_to_vmem [thread:$0]  %s332, 16, %s334, %s305
          %s337 = sadd.s32 %s300, 2
          %s338 = sld [smem:[#allocation5 + %s337]]
          %s339 = scalar_lea.hbm %s1, %s338
          %s340 = sadd.s32 2, %s303
          %s341 = scalar_lea.vmem [#allocation2], %s340
          // Predicated region
          $region77: #{tpu_custom_call.1} parent=67 // pred_check
            _
          $region78: #{tpu_custom_call.1} parent=67 // pred_check_branch
            %343 = sbr.rel target = $region80
          $region79: #{tpu_custom_call.1} parent=67 // pred_region
            %344 = sst [smem:[#allocation12]] [#allocation33]
            %345 = sst [smem:[#allocation13]] [#allocation32]
          $region80: #{tpu_custom_call.1} parent=67 // pred_fallthru
            _
          %347 = shalt.err (0)
          %s349 = sshll.u32 %s339, 4
          %s350 = int_to_ptr.hbm [resolvable:$true] %s349
          %s351 = sshll.u32 %s341, 4
          %s352 = int_to_ptr.vmem [resolvable:$true] %s351
          %354 = dma.hbm_to_vmem [thread:$0]  %s350, 16, %s352, %s305
          %s355 = sadd.s32 %s300, 3
          %s356 = sld [smem:[#allocation5 + %s355]]
          %s357 = scalar_lea.hbm %s1, %s356
          %s358 = sadd.s32 3, %s303
          %s359 = scalar_lea.vmem [#allocation2], %s358
          // Predicated region
          $region81: #{tpu_custom_call.1} parent=67 // pred_check
            _
          $region82: #{tpu_custom_call.1} parent=67 // pred_check_branch
            %361 = sbr.rel target = $region84
          $region83: #{tpu_custom_call.1} parent=67 // pred_region
            %362 = sst [smem:[#allocation12]] [#allocation35]
            %363 = sst [smem:[#allocation13]] [#allocation34]
          $region84: #{tpu_custom_call.1} parent=67 // pred_fallthru
            _
          %365 = shalt.err (0)
          %s367 = sshll.u32 %s357, 4
          %s368 = int_to_ptr.hbm [resolvable:$true] %s367
          %s369 = sshll.u32 %s359, 4
          %s370 = int_to_ptr.vmem [resolvable:$true] %s369
          %372 = dma.hbm_to_vmem [thread:$0]  %s368, 16, %s370, %s305
          %s373 = sadd.s32 %s300, 4
          %s374 = sld [smem:[#allocation5 + %s373]]
          %s375 = scalar_lea.hbm %s1, %s374
          %s376 = sadd.s32 4, %s303
          %s377 = scalar_lea.vmem [#allocation2], %s376
          // Predicated region
          $region85: #{tpu_custom_call.1} parent=67 // pred_check
            _
          $region86: #{tpu_custom_call.1} parent=67 // pred_check_branch
            %379 = sbr.rel target = $region88
          $region87: #{tpu_custom_call.1} parent=67 // pred_region
            %380 = sst [smem:[#allocation12]] [#allocation37]
            %381 = sst [smem:[#allocation13]] [#allocation36]
          $region88: #{tpu_custom_call.1} parent=67 // pred_fallthru
            _
          %383 = shalt.err (0)
          %s385 = sshll.u32 %s375, 4
          %s386 = int_to_ptr.hbm [resolvable:$true] %s385
          %s387 = sshll.u32 %s377, 4
          %s388 = int_to_ptr.vmem [resolvable:$true] %s387
          %390 = dma.hbm_to_vmem [thread:$0]  %s386, 16, %s388, %s305
          %s391 = sadd.s32 %s300, 5
          %s392 = sld [smem:[#allocation5 + %s391]]
          %s393 = scalar_lea.hbm %s1, %s392
          %s394 = sadd.s32 5, %s303
          %s395 = scalar_lea.vmem [#allocation2], %s394
          // Predicated region
          $region89: #{tpu_custom_call.1} parent=67 // pred_check
            _
          $region90: #{tpu_custom_call.1} parent=67 // pred_check_branch
            %397 = sbr.rel target = $region92
          $region91: #{tpu_custom_call.1} parent=67 // pred_region
            %398 = sst [smem:[#allocation12]] [#allocation39]
            %399 = sst [smem:[#allocation13]] [#allocation38]
          $region92: #{tpu_custom_call.1} parent=67 // pred_fallthru
            _
          %401 = shalt.err (0)
          %s403 = sshll.u32 %s393, 4
          %s404 = int_to_ptr.hbm [resolvable:$true] %s403
          %s405 = sshll.u32 %s395, 4
          %s406 = int_to_ptr.vmem [resolvable:$true] %s405
          %408 = dma.hbm_to_vmem [thread:$0]  %s404, 16, %s406, %s305
          %s409 = sadd.s32 %s300, 6
          %s410 = sld [smem:[#allocation5 + %s409]]
          %s411 = scalar_lea.hbm %s1, %s410
          %s412 = sadd.s32 6, %s303
          %s413 = scalar_lea.vmem [#allocation2], %s412
          // Predicated region
          $region93: #{tpu_custom_call.1} parent=67 // pred_check
            _
          $region94: #{tpu_custom_call.1} parent=67 // pred_check_branch
            %415 = sbr.rel target = $region96
          $region95: #{tpu_custom_call.1} parent=67 // pred_region
            %416 = sst [smem:[#allocation12]] [#allocation41]
            %417 = sst [smem:[#allocation13]] [#allocation40]
          $region96: #{tpu_custom_call.1} parent=67 // pred_fallthru
            _
          %419 = shalt.err (0)
          %s421 = sshll.u32 %s411, 4
          %s422 = int_to_ptr.hbm [resolvable:$true] %s421
          %s423 = sshll.u32 %s413, 4
          %s424 = int_to_ptr.vmem [resolvable:$true] %s423
          %426 = dma.hbm_to_vmem [thread:$0]  %s422, 16, %s424, %s305
          %s427 = sadd.s32 %s300, 7
          %s428 = sld [smem:[#allocation5 + %s427]]
          %s429 = scalar_lea.hbm %s1, %s428
          %s430 = sadd.s32 7, %s303
          %s431 = scalar_lea.vmem [#allocation2], %s430
          // Predicated region
          $region97: #{tpu_custom_call.1} parent=67 // pred_check
            _
          $region98: #{tpu_custom_call.1} parent=67 // pred_check_branch
            %433 = sbr.rel target = $region100
          $region99: #{tpu_custom_call.1} parent=67 // pred_region
            %434 = sst [smem:[#allocation12]] [#allocation43]
            %435 = sst [smem:[#allocation13]] [#allocation42]
          $region100: #{tpu_custom_call.1} parent=67 // pred_fallthru
            _
          %437 = shalt.err (0)
          %s439 = sshll.u32 %s429, 4
          %s440 = int_to_ptr.hbm [resolvable:$true] %s439
          %s441 = sshll.u32 %s431, 4
          %s442 = int_to_ptr.vmem [resolvable:$true] %s441
          %444 = dma.hbm_to_vmem [thread:$0]  %s440, 16, %s442, %s305
        $region68: #{tpu_custom_call.1} parent=23 // pred_fallthru
          _
        %s445 = smul.u32 %s152, 8
        %s446 = scalar_lea.vmem [#allocation2], %s445
        %s447 = scalar_lea.sflag [#allocation3], %s152
        %s448 = smul.u32 8, 1
        %s449 = sshll.u32 %s448, 4
        %450 = dma.done %s447, %s449
        %v451 = vld [vmem:[%s446] sm:$0xff]
        %v452 = vld [vmem:[#allocation6] sm:$0xff]
        %v453 = vadd.f32 %v451, %v452
        %454 = vst [vmem:[%s140] sm:$0xff] %v453
        %s455 = sand.u32 %s74, 1
        %s456 = scalar_lea.sflag [#allocation8], %s455
        %s457 = sand.u32 %s74, 1
        %s458 = smul.addr %s457, 8
        %s459 = scalar_lea.vmem [#allocation9], %s458
        // Predicated region
        $region101: #{tpu_custom_call.1} parent=23 // pred_check
          %p460 = pneg %p84
        $region102: #{tpu_custom_call.1} parent=23 // pred_check_branch
          %462 = sbr.rel (%p460) target = $region104
        $region103: #{tpu_custom_call.1} parent=23 // pred_region
          %464 = vsyncadd %s456, 0
          %s465 = sadd.s32 %s30, %s31
          %s466 = smul.addr %s465, 8
          %s467 = scalar_lea.hbm %s3, %s466
          %s469 = sshll.u32 %s459, 4
          %s470 = int_to_ptr.vmem [resolvable:$true] %s469
          %s471 = sshll.u32 %s467, 4
          %s472 = int_to_ptr.hbm [resolvable:$true] %s471
          %474 = dma.vmem_to_hbm [thread:$0]  %s470, 128, %s472, %s456
        $region104: #{tpu_custom_call.1} parent=23 // pred_fallthru
          _
      $region24: #{tpu_custom_call.1} parent=5 // pred_fallthru
        _
      %p475 = scmp.le.s32.totalorder 2, %s21
      // Predicated region
      $region105: #{tpu_custom_call.1} parent=5 // pred_check
        %p476 = pneg %p475
      $region106: #{tpu_custom_call.1} parent=5 // pred_check_branch
        %478 = sbr.rel (%p476) target = $region108
      $region107: #{tpu_custom_call.1} parent=5 // pred_region
        %s479 = ssub.s32 %s21, 2
        // Predicated region
        $region109: #{tpu_custom_call.1} parent=107 // pred_check
          %p480 = pneg %p90
        $region110: #{tpu_custom_call.1} parent=107 // pred_check_branch
          %482 = sbr.rel (%p480) target = $region112
        $region111: #{tpu_custom_call.1} parent=107 // pred_region
          %s483 = sand.u32 %s75, 1
          %s484 = scalar_lea.sflag [#allocation8], %s483
          %s485 = sand.u32 %s75, 1
          %s486 = smul.addr %s485, 8
          %s487 = scalar_lea.vmem [#allocation9], %s486
          %489 = dma.done %s484, 128
        $region112: #{tpu_custom_call.1} parent=107 // pred_fallthru
          _
      $region108: #{tpu_custom_call.1} parent=5 // pred_fallthru
        _
    $region6: #{tpu_custom_call.1} parent=1 // loop_footer
      %s25 = sadd.s32 1, %s21
    $region7: #{tpu_custom_call.1} parent=1 // loop_footer_branch
      %20 = sbr.rel target = $region3
    $region8: #{tpu_custom_call.1} parent=1 // loop_exit
      _
    %490 = vsyncpa [#allocation7], 1
    %s491 = scalar_lea.sflag [#allocation7], 1
    %492 = vsyncpa %s491, 1
    %493 = vsyncpa [#allocation8], 1
    %s494 = scalar_lea.sflag [#allocation8], 1
    %495 = vsyncpa %s494, 1
  %496 = vsyncmov [#allocation3]
  %s497 = vpop.sfrf %496
  %p498 = scmp.eq.s32.totalorder %s497, 0
  %p499 = pneg %p498
  %501 = shalt.err (%p499)
  %s502 = scalar_lea.sflag [#allocation3], 1
  %503 = vsyncmov %s502
  %s504 = vpop.sfrf %503
  %p505 = scmp.eq.s32.totalorder %s504, 0
  %p506 = pneg %p505
  %508 = shalt.err (%p506)

</llo_original>
